<compile_context>
chip_gen: v7x
topology: tpu7x:2x2x1
jax: 0.10.0
libtpu: 0.0.40
codegen_flags: <defaults>
</compile_context>

<pallas_src>
import jax
import jax.numpy as jnp
from jax.experimental import pallas as pl
from jax.experimental.pallas import tpu as pltpu

_LANE_CANDIDATES = (4096, 2048, 1024, 512, 256, 128)
_SMALL_BLOCK_CLIFF = 512 << 10  # measured ~3x throughput cliff below this


def _xblock_kernel(p_ref, x_ref, u_ref, res_ref, o_ref):
    # p_ref (SMEM, f32): [0] = 1 - p2, [1] = p1, [2] = p2
    c0 = p_ref[0]
    p1 = p_ref[1]
    p2 = p_ref[2]
    out = c0 * x_ref[...] - p1 * res_ref[...] + p2 * u_ref[...]
    o_ref[...] = out.astype(o_ref.dtype)


def _choose_layout(n_elem, itemsize, target_block_bytes):
    """Pick (rows, lanes, tile_rows) with rows*lanes == n_elem, tile_rows | rows.

    Returns None when no well-shaped exact layout exists; the caller then
    takes the prefix-kernel + jnp-tail path.
    """
    sub = max(8, 32 // itemsize)  # min sublane tile: f32 -> 8, bf16 -> 16
    total_bytes = n_elem * itemsize

    # Minimum grid length: >= 4 steps keeps both v7x TensorCores fed and the
    # DMA pipeline full; tiny tensors are overhead-dominated, leave them alone.
    if total_bytes >= 4 * _SMALL_BLOCK_CLIFF:
        min_grid = 4
    elif total_bytes >= (128 << 10):
        min_grid = 2
    else:
        min_grid = 1
    min_block = min(_SMALL_BLOCK_CLIFF, max(total_bytes // 4, 1))

    best, best_key = None, None
    for lanes in _LANE_CANDIDATES:
        if n_elem % lanes:
            continue
        rows = n_elem // lanes
        row_bytes = lanes * itemsize
        cands = []
        # Divisors of `rows` that are sublane-aligned and fit the block budget.
        max_tile_rows = min(rows, max(sub, target_block_bytes // row_bytes))
        d = sub
        while d <= max_tile_rows:
            if rows % d == 0:
                cands.append(d)
            d += sub
        # Whole-rows block (block dim == full array dim) is always layout-legal.
        if rows * row_bytes <= target_block_bytes:
            cands.append(rows)
        for tr in cands:
            grid = rows // tr
            block_bytes = tr * row_bytes
            key = (
                grid >= min_grid,                        # megacore / pipelining
                block_bytes >= min_block,                # off the small-block cliff
                -abs(block_bytes - target_block_bytes),  # near the roofline plateau
                lanes,                                   # longer contiguous rows
            )
            if best_key is None or key > best_key:
                best_key, best = key, (rows, lanes, tr)

    if best is not None and total_bytes >= (4 << 20):
        # Degenerate-divisor guard: a large tensor stuck with tiny blocks is
        # the ~3x cliff; the tail-split path will use well-shaped chunks.
        _, lanes, tr = best
        if tr * lanes * itemsize < _SMALL_BLOCK_CLIFF:
            return None
    return best


def _pallas_elementwise(params, x2, u2, r2, tile_rows, lanes, dtype, donate_x):
    rows = x2.shape[0]
    blk = pl.BlockSpec((tile_rows, lanes), lambda i: (i, 0))
    return pl.pallas_call(
        _xblock_kernel,
        out_shape=jax.ShapeDtypeStruct((rows, lanes), dtype),
        grid=(rows // tile_rows,),
        in_specs=[
            pl.BlockSpec(memory_space=pltpu.SMEM),  # (1 - p2, p1, p2) scalars
            blk,  # x
            blk,  # u
            blk,  # res
        ],
        out_specs=blk,
        input_output_aliases=({1: 0} if donate_x else {}),
        compiler_params=pltpu.CompilerParams(
            dimension_semantics=("parallel",),
            vmem_limit_bytes=40 << 20,
        ),
    )(params, x2, u2, r2)


def xblock_forward(x, u, res, ics, p1, p2, *, target_block_bytes=4 << 20,
                   donate_x=False):
    """x, u, res: same-shape arrays (NCHW in the module). ics is unused."""
    del ics  # unused in the PyTorch forward
    orig_shape, dtype = x.shape, x.dtype
    n_elem = x.size
    itemsize = jnp.dtype(dtype).itemsize

    p1f = jnp.asarray(p1, jnp.float32).reshape(())
    p2f = jnp.asarray(p2, jnp.float32).reshape(())
    # out = (1 - p2) * x - p1 * res + p2 * u   (same math, shorter dep chain)
    params = jnp.stack([1.0 - p2f, p1f, p2f])

    layout = _choose_layout(n_elem, itemsize, target_block_bytes)
    if layout is not None:
        rows, lanes, tile_rows = layout
        out2 = _pallas_elementwise(
            params,
            x.reshape(rows, lanes),
            u.reshape(rows, lanes),
            res.reshape(rows, lanes),
            tile_rows, lanes, dtype, donate_x)
        return out2.reshape(orig_shape)

    # Ragged flat length: run the kernel on the chunk-aligned prefix and
    # finish the (< one chunk) tail with fused jnp ops.  This avoids the old
    # jnp.pad fallback, which re-read and re-wrote every operand.
    lanes = 1024
    sub = max(8, 32 // itemsize)
    tile_rows = max(sub, (target_block_bytes // (lanes * itemsize)) // sub * sub)
    chunk = tile_rows * lanes
    n_main = (n_elem // chunk) * chunk

    x1, u1, r1 = x.reshape(-1), u.reshape(-1), res.reshape(-1)
    pieces = []
    if n_main:
        rows = n_main // lanes
        out_main = _pallas_elementwise(
            params,
            x1[:n_main].reshape(rows, lanes),
            u1[:n_main].reshape(rows, lanes),
            r1[:n_main].reshape(rows, lanes),
            tile_rows, lanes, dtype, donate_x=False)
        pieces.append(out_main.reshape(-1))
    if n_main < n_elem:
        # TODO(synk): fold the tail into the last kernel block with a masked
        # pltpu.store (SMEM element-count scalar) instead of this jnp epilogue.
        xt = x1[n_main:].astype(jnp.float32)
        ut = u1[n_main:].astype(jnp.float32)
        rt = r1[n_main:].astype(jnp.float32)
        tail = params[0] * xt - params[1] * rt + params[2] * ut
        pieces.append(tail.astype(dtype))
    out = pieces[0] if len(pieces) == 1 else jnp.concatenate(pieces)
    return out.reshape(orig_shape)


def _reference(x, u, res, p1, p2):
    return x - p1 * res - p2 * (x - u)


if __name__ == "__main__":
    key = jax.random.PRNGKey(0)

    # Deterministic parameter init, matching nn.Parameter(torch.Tensor([0.1]))
    p1 = jnp.array(0.1, dtype=jnp.float32)
    p2 = jnp.array(0.1, dtype=jnp.float32)

    # (shape, target_block_bytes):
    #  1) small conv-shaped NCHW tensor (single-block path)
    #  2) larger tensor exercising the multi-step (grid >= 4) tiled path
    #  3) tiny ragged tensor (pure-jnp tail path)
    #  4) ragged tensor with a kernel-aligned prefix + jnp tail (small chunk
    #     target so the prefix path is exercised at test sizes)
    cases = [
        ((2, 4, 16, 16), 4 << 20),
        ((4, 16, 128, 128), 4 << 20),
        ((1, 3, 5, 7), 4 << 20),
        ((2, 3, 41, 41), 32 << 10),
    ]

    ok = True
    for shape, tbb in cases:
        key, kx, ku, kr, ki = jax.random.split(key, 5)
        x = jax.random.normal(kx, shape, dtype=jnp.float32)
        u = jax.random.normal(ku, shape, dtype=jnp.float32)
        res = jax.random.normal(kr, shape, dtype=jnp.float32)
        ics = jax.random.normal(ki, shape, dtype=jnp.float32)  # unused, parity

        out = xblock_forward(x, u, res, ics, p1, p2, target_block_bytes=tbb)
        out = jax.block_until_ready(out)

        ref = _reference(x, u, res, p1, p2)
        if out.shape != shape or not jnp.allclose(out, ref, atol=1e-5, rtol=1e-5):
            ok = False

    assert ok
    print("KERNEL_OK")
</pallas_src>

<mosaic_0001>
module attributes {stable_mosaic.version = 11 : i64} {
  func.func @_xblock_kernel(%arg0: i32, %arg1: memref<3xf32, #tpu.memory_space<smem>>, %arg2: memref<1x2048xf32, #tpu.memory_space<vmem>>, %arg3: memref<1x2048xf32, #tpu.memory_space<vmem>>, %arg4: memref<1x2048xf32, #tpu.memory_space<vmem>>, %arg5: memref<1x2048xf32, #tpu.memory_space<vmem>>) attributes {dimension_semantics = [#tpu.dimension_semantics<parallel>], iteration_bounds = array<i64: 1>, scalar_prefetch = 0 : i64, scratch_operands = 0 : i64, tpu.core_type = #tpu.core_type<tc>, window_params = [{transform_indices = @transform_0, window_bounds = array<i64: 3>}, {transform_indices = @transform_1, window_bounds = array<i64: 1, 2048>}, {transform_indices = @transform_2, window_bounds = array<i64: 1, 2048>}, {transform_indices = @transform_3, window_bounds = array<i64: 1, 2048>}, {transform_indices = @transform_4, window_bounds = array<i64: 1, 2048>}]} {
    %c0 = arith.constant 0 : index
    %0 = memref.load %arg1[%c0] : memref<3xf32, #tpu.memory_space<smem>>
    %c1 = arith.constant 1 : index
    %1 = memref.load %arg1[%c1] : memref<3xf32, #tpu.memory_space<smem>>
    %c2 = arith.constant 2 : index
    %2 = memref.load %arg1[%c2] : memref<3xf32, #tpu.memory_space<smem>>
    %c0_0 = arith.constant 0 : index
    %c0_1 = arith.constant 0 : index
    %3 = vector.load %arg2[%c0_0, %c0_1] : memref<1x2048xf32, #tpu.memory_space<vmem>>, vector<1x2048xf32>
    %4 = vector.broadcast %0 : f32 to vector<1x2048xf32>
    %5 = arith.mulf %4, %3 : vector<1x2048xf32>
    %c0_2 = arith.constant 0 : index
    %c0_3 = arith.constant 0 : index
    %6 = vector.load %arg4[%c0_2, %c0_3] : memref<1x2048xf32, #tpu.memory_space<vmem>>, vector<1x2048xf32>
    %7 = vector.broadcast %1 : f32 to vector<1x2048xf32>
    %8 = arith.mulf %7, %6 : vector<1x2048xf32>
    %9 = arith.subf %5, %8 : vector<1x2048xf32>
    %c0_4 = arith.constant 0 : index
    %c0_5 = arith.constant 0 : index
    %10 = vector.load %arg3[%c0_4, %c0_5] : memref<1x2048xf32, #tpu.memory_space<vmem>>, vector<1x2048xf32>
    %11 = vector.broadcast %2 : f32 to vector<1x2048xf32>
    %12 = arith.mulf %11, %10 : vector<1x2048xf32>
    %13 = arith.addf %9, %12 : vector<1x2048xf32>
    %c0_6 = arith.constant 0 : index
    %c0_7 = arith.constant 0 : index
    %14 = vector.load %arg5[%c0_6, %c0_7] : memref<1x2048xf32, #tpu.memory_space<vmem>>, vector<1x2048xf32>
    tpu.vector_store %arg5[%c0_6, %c0_7], %13 {strides = array<i32>} : memref<1x2048xf32, #tpu.memory_space<vmem>>, vector<1x2048xf32>,
    return
  }
  func.func @transform_0(%arg0: i32) -> i32 {
    %c0_i32 = arith.constant 0 : i32
    %c0_i32_0 = arith.constant 0 : i32
    return %c0_i32 : i32
  }
  func.func @transform_1(%arg0: i32) -> (i32, i32) {
    %c0_i32 = arith.constant 0 : i32
    %c0_i32_0 = arith.constant 0 : i32
    return %arg0, %c0_i32 : i32, i32
  }
  func.func @transform_2(%arg0: i32) -> (i32, i32) {
    %c0_i32 = arith.constant 0 : i32
    %c0_i32_0 = arith.constant 0 : i32
    return %arg0, %c0_i32 : i32, i32
  }
  func.func @transform_3(%arg0: i32) -> (i32, i32) {
    %c0_i32 = arith.constant 0 : i32
    %c0_i32_0 = arith.constant 0 : i32
    return %arg0, %c0_i32 : i32, i32
  }
  func.func @transform_4(%arg0: i32) -> (i32, i32) {
    %c0_i32 = arith.constant 0 : i32
    %c0_i32_0 = arith.constant 0 : i32
    return %arg0, %c0_i32 : i32, i32
  }
}

</mosaic_0001>

<llo_original>
// kernel: tpu_custom_call.1
$region0: #{tpu_custom_call.1}
  #allocation0 [shape = 'u32[]', space=smem, size = 0x4, offset = 0x4, fixed_abs, tag = 'smem constant byte address 0x4 - core index']
  #allocation1 [shape = 'u32[144,128]{1,0:T(1,128)}', space=vmem, size = 0x12000, scoped, tag = 'internal scratch']
  %s0 = inlined_call_operand.hbm [shape: f32[3], index: 0, kind: input, shape index: {}]
  %s1 = inlined_call_operand.hbm [shape: f32[1,2048], index: 1, kind: input, shape index: {}]
  %s2 = inlined_call_operand.hbm [shape: f32[1,2048], index: 2, kind: input, shape index: {}]
  %s3 = inlined_call_operand.hbm [shape: f32[1,2048], index: 3, kind: input, shape index: {}]
  %s4 = inlined_call_operand.hbm [shape: f32[1,2048], index: 4, kind: output, shape index: {}]
  %s5 = sld [smem:[#allocation0]]
  $region42: #{tpu_custom_call.1} parent=0
    _
  %s7 = ssub.s32 1, %s5
  %s8 = scalar_select 0, %s7, %s5
  $region1: #{tpu_custom_call.1} parent=0
    #allocation2 [shape = 'u8[512]{0}', space=smem, size = 0x200, scoped, tag = 'input window, operand 0, single buffered']
    #allocation3 [shape = 's32[1]{0}', space=sflag, size = 0x4, scoped, tag = 'scoped memory for tpu_custom_call.1']
    #allocation4 [shape = 's32[1]{0}', space=sflag, size = 0x4, scoped, tag = 'scoped memory for tpu_custom_call.1']
    #allocation5 [shape = 's32[1]{0}', space=sflag, size = 0x4, scoped, tag = 'scoped memory for tpu_custom_call.1']
    #allocation6 [shape = 'u8[8192]{0}', space=vmem, size = 0x2000, scoped, tag = 'input window, operand 1, single buffered']
    #allocation7 [shape = 'u8[8192]{0}', space=vmem, size = 0x2000, scoped, tag = 'input window, operand 2, single buffered']
    #allocation8 [shape = 's32[1]{0}', space=sflag, size = 0x4, scoped, tag = 'scoped memory for tpu_custom_call.1']
    #allocation9 [shape = 'u8[8192]{0}', space=vmem, size = 0x2000, scoped, tag = 'input window, operand 3, single buffered']
    #allocation10 [shape = 'u8[8192]{0}', space=vmem, size = 0x2000, scoped, tag = 'output window, operand 0, single buffered']
    %9 = vsyncpa [#allocation5], 0
    %10 = vsyncpa [#allocation3], 0
    %11 = vsyncpa [#allocation8], 0
    %12 = vsyncpa [#allocation4], 0
    // Predicated region
    $region2: #{tpu_custom_call.1} parent=1 // pred_check
      _
    $region3: #{tpu_custom_call.1} parent=1 // pred_check_branch
      %14 = sbr.rel (0) target = $region5
    $region4: #{tpu_custom_call.1} parent=1 // pred_region
      %s16 = ssub.s32 16, 16
      %17 = vsyncadd [#allocation5], %s16
      %20 = dma.hbm_to_smem %s0, 16, [#allocation2], [#allocation5]
    $region5: #{tpu_custom_call.1} parent=1 // pred_fallthru
      _
    // Predicated region
    $region6: #{tpu_custom_call.1} parent=1 // pred_check
      _
    $region7: #{tpu_custom_call.1} parent=1 // pred_check_branch
      %22 = sbr.rel (0) target = $region9
    $region8: #{tpu_custom_call.1} parent=1 // pred_region
      %s24 = ssub.s32 256, 256
      %25 = vsyncadd [#allocation3], %s24
      %s27 = sshll.u32 [#allocation6], 4
      %s28 = int_to_ptr.vmem [resolvable:$true] %s27
      %30 = dma.hbm_to_vmem [thread:$0]  %s1, 256, %s28, [#allocation3]
    $region9: #{tpu_custom_call.1} parent=1 // pred_fallthru
      _
    // Predicated region
    $region10: #{tpu_custom_call.1} parent=1 // pred_check
      _
    $region11: #{tpu_custom_call.1} parent=1 // pred_check_branch
      %32 = sbr.rel (0) target = $region13
    $region12: #{tpu_custom_call.1} parent=1 // pred_region
      %s34 = ssub.s32 256, 256
      %35 = vsyncadd [#allocation8], %s34
      %s37 = sshll.u32 [#allocation7], 4
      %s38 = int_to_ptr.vmem [resolvable:$true] %s37
      %40 = dma.hbm_to_vmem [thread:$0]  %s2, 256, %s38, [#allocation8]
    $region13: #{tpu_custom_call.1} parent=1 // pred_fallthru
      _
    // Predicated region
    $region14: #{tpu_custom_call.1} parent=1 // pred_check
      _
    $region15: #{tpu_custom_call.1} parent=1 // pred_check_branch
      %42 = sbr.rel (0) target = $region17
    $region16: #{tpu_custom_call.1} parent=1 // pred_region
      %s44 = ssub.s32 256, 256
      %45 = vsyncadd [#allocation8], %s44
      %s47 = sshll.u32 [#allocation9], 4
      %s48 = int_to_ptr.vmem [resolvable:$true] %s47
      %50 = dma.hbm_to_vmem [thread:$0]  %s3, 256, %s48, [#allocation8]
    $region17: #{tpu_custom_call.1} parent=1 // pred_fallthru
      _
    // Predicated region
    $region18: #{tpu_custom_call.1} parent=1 // pred_check
      _
    $region19: #{tpu_custom_call.1} parent=1 // pred_check_branch
      %52 = sbr.rel (0) target = $region21
    $region20: #{tpu_custom_call.1} parent=1 // pred_region
      %53 = dma.done [#allocation5], 16
    $region21: #{tpu_custom_call.1} parent=1 // pred_fallthru
      _
    // Predicated region
    $region22: #{tpu_custom_call.1} parent=1 // pred_check
      _
    $region23: #{tpu_custom_call.1} parent=1 // pred_check_branch
      %55 = sbr.rel (0) target = $region25
    $region24: #{tpu_custom_call.1} parent=1 // pred_region
      %56 = dma.done [#allocation3], 256
    $region25: #{tpu_custom_call.1} parent=1 // pred_fallthru
      _
    // Predicated region
    $region26: #{tpu_custom_call.1} parent=1 // pred_check
      _
    $region27: #{tpu_custom_call.1} parent=1 // pred_check_branch
      %58 = sbr.rel (0) target = $region29
    $region28: #{tpu_custom_call.1} parent=1 // pred_region
      %59 = dma.done [#allocation8], 256
    $region29: #{tpu_custom_call.1} parent=1 // pred_fallthru
      _
    // Predicated region
    $region30: #{tpu_custom_call.1} parent=1 // pred_check
      _
    $region31: #{tpu_custom_call.1} parent=1 // pred_check_branch
      %61 = sbr.rel (0) target = $region33
    $region32: #{tpu_custom_call.1} parent=1 // pred_region
      %62 = dma.done [#allocation8], 256
    $region33: #{tpu_custom_call.1} parent=1 // pred_fallthru
      _
    %63 = sfence
    %s64 = sld [smem:[#allocation2]]
    %s65 = sld [smem:[#allocation2 + $0x1]]
    %s66 = sld [smem:[#allocation2 + $0x2]]
    %v67 = vld [vmem:[#allocation6] sm:$0xff]
    %v68 = vld [vmem:[#allocation6 + $0x8] sm:$0xff]
    %v69 = vstv %s64
    %v70 = vmul.f32 %v69, %v67
    %v71 = vmul.f32 %v69, %v68
    %v72 = vld [vmem:[#allocation9] sm:$0xff]
    %v73 = vld [vmem:[#allocation9 + $0x8] sm:$0xff]
    %v74 = vstv %s65
    %v75 = vmul.f32 %v74, %v72
    %v76 = vmul.f32 %v74, %v73
    %v77 = vsub.f32 %v70, %v75
    %v78 = vsub.f32 %v71, %v76
    %v79 = vld [vmem:[#allocation7] sm:$0xff]
    %v80 = vld [vmem:[#allocation7 + $0x8] sm:$0xff]
    %v81 = vstv %s66
    %v82 = vmul.f32 %v81, %v79
    %v83 = vmul.f32 %v81, %v80
    %v84 = vadd.f32 %v77, %v82
    %v85 = vadd.f32 %v78, %v83
    %86 = vst [vmem:[#allocation10] sm:$0xff] %v84
    %87 = vst [vmem:[#allocation10 + $0x8] sm:$0xff] %v85
    // Predicated region
    $region34: #{tpu_custom_call.1} parent=1 // pred_check
      _
    $region35: #{tpu_custom_call.1} parent=1 // pred_check_branch
      %89 = sbr.rel (0) target = $region37
    $region36: #{tpu_custom_call.1} parent=1 // pred_region
      %s91 = ssub.s32 256, 256
      %92 = vsyncadd [#allocation4], %s91
      %s94 = sshll.u32 [#allocation10], 4
      %s95 = int_to_ptr.vmem [resolvable:$true] %s94
      %97 = dma.vmem_to_hbm [thread:$0]  %s95, 256, %s4, [#allocation4]
    $region37: #{tpu_custom_call.1} parent=1 // pred_fallthru
      _
    // Predicated region
    $region38: #{tpu_custom_call.1} parent=1 // pred_check
      _
    $region39: #{tpu_custom_call.1} parent=1 // pred_check_branch
      %99 = sbr.rel (0) target = $region41
    $region40: #{tpu_custom_call.1} parent=1 // pred_region
      %100 = dma.done [#allocation4], 256
    $region41: #{tpu_custom_call.1} parent=1 // pred_fallthru
      _
    %101 = vsyncpa [#allocation3], 1
    %102 = vsyncpa [#allocation8], 1
    %103 = vsyncpa [#allocation4], 1
    %104 = vsyncpa [#allocation5], 1

</llo_original>
